<compile_context>
chip_gen: v7x
topology: tpu7x:2x2x1
jax: 0.10.0
libtpu: 0.0.40
codegen_flags: <defaults>
</compile_context>

<pallas_src>
import functools
import math

import jax
import jax.numpy as jnp
from jax.experimental import pallas as pl
from jax.experimental.pallas import tpu as pltpu

_LANE = 128
_SUBLANE = 8


def _round_up(v, m):
    return ((v + m - 1) // m) * m


def _gelu(x, approximate):
    if approximate:
        # tanh-approx GELU runs on the otherwise-idle EUP slot (useful on v5e where the exact-erf
        # polynomial can saturate the VALU); deviates from torch's exact GELU at the ~1e-3 level.
        return jax.nn.gelu(x, approximate=True)
    # torch.nn.GELU() default: exact erf formulation.
    return 0.5 * x * (1.0 + jax.lax.erf(x * (1.0 / math.sqrt(2.0))))


def _cat_net_kernel(x_ref, w1_ref, b1_ref, w2_ref, b2_ref, w3_ref, b3_ref, o_ref,
                    *, normalize_logits, approximate_gelu):
    # x arrives untouched (f32) and is cast to bf16 here, right before the MXU; weights are bf16,
    # matmuls accumulate in f32, bias / GELU / logsumexp stay in f32.
    # NOTE: in the (partial) last row block, out-of-range rows hold uninitialized data and may
    # produce garbage/NaN logits -- rows are independent and their stores are masked, so valid
    # outputs are unaffected.
    x = x_ref[...].astype(jnp.bfloat16)

    h = jnp.dot(x, w1_ref[...], preferred_element_type=jnp.float32) + b1_ref[...]
    h = _gelu(h, approximate_gelu)                       # Dropout(p=0) is the identity
    h = h.astype(jnp.bfloat16)

    h = jnp.dot(h, w2_ref[...], preferred_element_type=jnp.float32) + b2_ref[...]
    h = h.astype(jnp.bfloat16)

    logits = jnp.dot(h, w3_ref[...], preferred_element_type=jnp.float32) + b3_ref[...]

    if normalize_logits:
        m = jnp.max(logits, axis=-1, keepdims=True)
        lse = m + jnp.log(jnp.sum(jnp.exp(logits - m), axis=-1, keepdims=True))
        logits = logits - lse

    o_ref[...] = logits.astype(o_ref.dtype)


def _vmem_capacity_bytes():
    """Physical VMEM per TensorCore; falls back to the smallest current part (v7x, 64 MiB)."""
    try:  # capability probe only -- never used to hide kernel lowering errors
        cap = getattr(pltpu.get_tpu_info(), "vmem_capacity_bytes", None)
        if cap:
            return int(cap)
    except Exception:
        pass
    return 64 << 20


def _pick_row_tile(in_dim, hidden_dim, n_modes, x_itemsize, out_itemsize, vmem_budget):
    """Largest row tile (<= 2048) whose working set fits the VMEM budget."""
    kp, hp, mp = (_round_up(d, _LANE) for d in (in_dim, hidden_dim, n_modes))
    # VMEM that does not scale with the row tile: resident bf16 weights (2 buffers) + f32 biases.
    fixed = 2 * 2 * (kp * kp + kp * hp + hp * mp) + 2 * 4 * (kp + hp + mp)
    # Per-row cost: double-buffered x / out blocks + f32/bf16 intermediates.
    per_row = 2 * x_itemsize * kp + 2 * out_itemsize * mp + 8 * (kp + hp + mp)
    avail = vmem_budget - fixed - (4 << 20)              # headroom for Mosaic internal scratch
    for t in (2048, 1024, 512, 256, 128, 64, 32, 16, 8):
        if t * per_row <= avail:
            return t
    return _SUBLANE


def init_categorical_network_params(key, in_dim, n_modes, hidden_dim=None, dtype=jnp.float32):
    """Deterministic synthetic parameters (xavier-ish weights, uniform biases).

    Weights are stored transposed relative to PyTorch, i.e. (in_features, out_features),
    so the kernel computes y = x @ W + b directly on the MXU.
    """
    if hidden_dim is None:
        hidden_dim = in_dim
    k1, k2, k3, k4, k5, k6 = jax.random.split(key, 6)

    def xavier(k, fan_in, fan_out):
        lim = math.sqrt(6.0 / (fan_in + fan_out))
        return jax.random.uniform(k, (fan_in, fan_out), dtype, -lim, lim)

    def bias(k, fan_in, fan_out):
        lim = 1.0 / math.sqrt(fan_in)
        return jax.random.uniform(k, (1, fan_out), dtype, -lim, lim)

    return {
        "w1": xavier(k1, in_dim, in_dim),      "b1": bias(k2, in_dim, in_dim),
        "w2": xavier(k3, in_dim, hidden_dim),  "b2": bias(k4, in_dim, hidden_dim),
        "w3": xavier(k5, hidden_dim, n_modes), "b3": bias(k6, hidden_dim, n_modes),
    }


def categorical_network_forward(x, params, normalize_logits=True, *,
                                row_tile=None, approximate_gelu=False):
    """x: (..., in_dim) -> (..., n_modes), matching CategoricalNetwork.forward."""
    in_dim = x.shape[-1]
    hidden_dim = params["w2"].shape[1]
    n_modes = params["w3"].shape[1]
    out_dtype = x.dtype

    lead_shape = x.shape[:-1]
    x2 = x.reshape(-1, in_dim)               # no pad, no cast: x goes to the kernel untouched
    n_rows = x2.shape[0]

    x_isz = jnp.dtype(x.dtype).itemsize
    out_isz = jnp.dtype(out_dtype).itemsize

    vmem_budget = (_vmem_capacity_bytes() * 3) // 4      # ~48 MiB v7x, ~96 MiB v5e/v6e

    if row_tile is None:
        row_tile = _pick_row_tile(in_dim, hidden_dim, n_modes, x_isz, out_isz, vmem_budget)
    # Megacore: keep >= 4 grid steps (>= 2 per TensorCore on 2-TC parts) when the batch allows.
    if n_rows >= 4 * _SUBLANE:
        row_tile = min(row_tile, _round_up(pl.cdiv(n_rows, 4), _SUBLANE))
    # Never tile more rows than the (sublane-rounded) batch actually has.
    row_tile = max(_SUBLANE, min(row_tile, _round_up(n_rows, _SUBLANE)))

    grid = (pl.cdiv(n_rows, row_tile),)      # partial last block; OOB rows are masked on store

    # Weights: one tiny wrapper cast to bf16 (resident, and much smaller than x for real
    # batches); biases stay f32 so bias / GELU / logsumexp arithmetic is exact.
    w1 = params["w1"].astype(jnp.bfloat16)
    b1 = params["b1"].astype(jnp.float32)
    w2 = params["w2"].astype(jnp.bfloat16)
    b2 = params["b2"].astype(jnp.float32)
    w3 = params["w3"].astype(jnp.bfloat16)
    b3 = params["b3"].astype(jnp.float32)

    kernel = functools.partial(_cat_net_kernel,
                               normalize_logits=normalize_logits,
                               approximate_gelu=approximate_gelu)

    # VMEM estimate (lane-rounded, 1.5x margin) for the scoped limit, capped at the
    # generation-aware budget.
    kp, hp, mp = (_round_up(d, _LANE) for d in (in_dim, hidden_dim, n_modes))
    est = (2 * x_isz * row_tile * kp                     # x tile, double-buffered
           + 2 * out_isz * row_tile * mp                 # out tile, double-buffered
           + 2 * 2 * (kp * kp + kp * hp + hp * mp)       # resident bf16 weights (2 buffers)
           + 2 * 4 * (kp + hp + mp)                      # f32 biases
           + 8 * row_tile * (kp + hp + mp))              # f32 + bf16 intermediates
    vmem_limit = int(min(vmem_budget, max(3 * est // 2 + (4 << 20), 32 << 20)))
    # TODO(synk): if the resident bf16 weights alone overflow the budget (in_dim=hidden~4096 on
    # v7x's 64 MiB VMEM), tile w2/w3 over an extra "arbitrary" grid axis with an f32 accumulator
    # instead of keeping all three matrices resident.

    out = pl.pallas_call(
        kernel,
        out_shape=jax.ShapeDtypeStruct((n_rows, n_modes), out_dtype),
        grid_spec=pltpu.PrefetchScalarGridSpec(
            num_scalar_prefetch=0,
            grid=grid,
            in_specs=[
                pl.BlockSpec((row_tile, in_dim), lambda i: (i, 0)),   # x: unpadded f32
                # Constant index maps -> weights/biases stay resident across the row grid.
                pl.BlockSpec((in_dim, in_dim), lambda i: (0, 0)),
                pl.BlockSpec((1, in_dim), lambda i: (0, 0)),
                pl.BlockSpec((in_dim, hidden_dim), lambda i: (0, 0)),
                pl.BlockSpec((1, hidden_dim), lambda i: (0, 0)),
                pl.BlockSpec((hidden_dim, n_modes), lambda i: (0, 0)),
                pl.BlockSpec((1, n_modes), lambda i: (0, 0)),
            ],
            # Unpadded, full-dim last axis: stores exactly n_modes columns (masked vst when
            # n_modes % 128 != 0) -- no padded 128-lane writeback, no wrapper slice pass.
            out_specs=pl.BlockSpec((row_tile, n_modes), lambda i: (i, 0)),
        ),
        compiler_params=pltpu.CompilerParams(
            dimension_semantics=("parallel",),
            vmem_limit_bytes=vmem_limit,
        ),
    )(x2, w1, b1, w2, b2, w3, b3)

    return out.reshape(*lead_shape, n_modes)


def _reference_forward(x, params, normalize_logits=True, approximate_gelu=False):
    """Pure-JAX reference mirroring the kernel numerics (bf16 matmul operands, f32 accumulation)."""
    xb = x.astype(jnp.bfloat16)
    w1 = params["w1"].astype(jnp.bfloat16)
    w2 = params["w2"].astype(jnp.bfloat16)
    w3 = params["w3"].astype(jnp.bfloat16)
    h = jnp.dot(xb, w1, preferred_element_type=jnp.float32) + params["b1"][0].astype(jnp.float32)
    h = _gelu(h, approximate_gelu)
    h = jnp.dot(h.astype(jnp.bfloat16), w2,
                preferred_element_type=jnp.float32) + params["b2"][0].astype(jnp.float32)
    logits = jnp.dot(h.astype(jnp.bfloat16), w3,
                     preferred_element_type=jnp.float32) + params["b3"][0].astype(jnp.float32)
    if normalize_logits:
        logits = logits - jax.scipy.special.logsumexp(logits, axis=-1, keepdims=True)
    return logits.astype(x.dtype)


if __name__ == "__main__":
    key = jax.random.PRNGKey(0)
    kx, kparam = jax.random.split(key)

    batch, seq, in_dim, n_modes = 2, 8, 32, 8
    x = jax.random.normal(kx, (batch, seq, in_dim), dtype=jnp.float32)
    params = init_categorical_network_params(kparam, in_dim, n_modes, hidden_dim=None)

    out = categorical_network_forward(x, params, normalize_logits=True)
    out = jax.block_until_ready(out)

    ref = _reference_forward(x, params, normalize_logits=True)
    assert out.shape == (batch, seq, n_modes)
    assert jnp.allclose(out, ref, atol=2e-3, rtol=2e-3), "mismatch vs JAX reference"
    # Normalized logits must be a valid log-probability vector.
    assert jnp.allclose(jnp.sum(jnp.exp(out), axis=-1), 1.0, atol=1e-3)

    print("KERNEL_OK")
</pallas_src>

<mosaic_0001>
module attributes {stable_mosaic.version = 11 : i64} {
  func.func @_cat_net_kernel(%arg0: i32, %arg1: memref<16x32xf32, #tpu.memory_space<vmem>>, %arg2: memref<32x32xbf16, #tpu.memory_space<vmem>>, %arg3: memref<1x32xf32, #tpu.memory_space<vmem>>, %arg4: memref<32x32xbf16, #tpu.memory_space<vmem>>, %arg5: memref<1x32xf32, #tpu.memory_space<vmem>>, %arg6: memref<32x8xbf16, #tpu.memory_space<vmem>>, %arg7: memref<1x8xf32, #tpu.memory_space<vmem>>, %arg8: memref<16x8xf32, #tpu.memory_space<vmem>>) attributes {dimension_semantics = [#tpu.dimension_semantics<parallel>], iteration_bounds = array<i64: 1>, scalar_prefetch = 0 : i64, scratch_operands = 0 : i64, tpu.core_type = #tpu.core_type<tc>, window_params = [{transform_indices = @transform_0, window_bounds = array<i64: 16, 32>}, {pipeline_mode = #tpu.pipeline_mode<synchronous>, transform_indices = @transform_1, window_bounds = array<i64: 32, 32>}, {pipeline_mode = #tpu.pipeline_mode<synchronous>, transform_indices = @transform_2, window_bounds = array<i64: 1, 32>}, {pipeline_mode = #tpu.pipeline_mode<synchronous>, transform_indices = @transform_3, window_bounds = array<i64: 32, 32>}, {pipeline_mode = #tpu.pipeline_mode<synchronous>, transform_indices = @transform_4, window_bounds = array<i64: 1, 32>}, {pipeline_mode = #tpu.pipeline_mode<synchronous>, transform_indices = @transform_5, window_bounds = array<i64: 32, 8>}, {pipeline_mode = #tpu.pipeline_mode<synchronous>, transform_indices = @transform_6, window_bounds = array<i64: 1, 8>}, {transform_indices = @transform_7, window_bounds = array<i64: 16, 8>}]} {
    %c0 = arith.constant 0 : index
    %c0_0 = arith.constant 0 : index
    %0 = vector.load %arg1[%c0, %c0_0] : memref<16x32xf32, #tpu.memory_space<vmem>>, vector<16x32xf32>
    %1 = arith.truncf %0 : vector<16x32xf32> to vector<16x32xbf16>
    %c0_1 = arith.constant 0 : index
    %c0_2 = arith.constant 0 : index
    %2 = vector.load %arg2[%c0_1, %c0_2] : memref<32x32xbf16, #tpu.memory_space<vmem>>, vector<32x32xbf16>
    %cst = arith.constant dense<0.000000e+00> : vector<16x32xf32>
    %3 = tpu.matmul %1, %2, %cst {dimension_numbers = #tpu.dot_dimension_numbers<[1], [0], [0], [1], [0, 0, 1, 1], [], []>} : vector<16x32xbf16>, vector<32x32xbf16>, vector<16x32xf32> -> vector<16x32xf32>
    %c0_3 = arith.constant 0 : index
    %c0_4 = arith.constant 0 : index
    %4 = vector.load %arg3[%c0_3, %c0_4] : memref<1x32xf32, #tpu.memory_space<vmem>>, vector<1x32xf32>
    %5 = vector.broadcast %4 : vector<1x32xf32> to vector<16x32xf32>
    %6 = arith.addf %3, %5 : vector<16x32xf32>
    %cst_5 = arith.constant 5.000000e-01 : f32
    %7 = vector.broadcast %cst_5 : f32 to vector<16x32xf32>
    %8 = arith.mulf %7, %6 : vector<16x32xf32>
    %cst_6 = arith.constant 0.707106769 : f32
    %9 = vector.broadcast %cst_6 : f32 to vector<16x32xf32>
    %10 = arith.mulf %6, %9 : vector<16x32xf32>
    %11 = math.erf %10 : vector<16x32xf32>
    %cst_7 = arith.constant 1.000000e+00 : f32
    %12 = vector.broadcast %cst_7 : f32 to vector<16x32xf32>
    %13 = arith.addf %12, %11 : vector<16x32xf32>
    %14 = arith.mulf %8, %13 : vector<16x32xf32>
    %15 = arith.truncf %14 : vector<16x32xf32> to vector<16x32xbf16>
    %c0_8 = arith.constant 0 : index
    %c0_9 = arith.constant 0 : index
    %16 = vector.load %arg4[%c0_8, %c0_9] : memref<32x32xbf16, #tpu.memory_space<vmem>>, vector<32x32xbf16>
    %cst_10 = arith.constant dense<0.000000e+00> : vector<16x32xf32>
    %17 = tpu.matmul %15, %16, %cst_10 {dimension_numbers = #tpu.dot_dimension_numbers<[1], [0], [0], [1], [0, 0, 1, 1], [], []>} : vector<16x32xbf16>, vector<32x32xbf16>, vector<16x32xf32> -> vector<16x32xf32>
    %c0_11 = arith.constant 0 : index
    %c0_12 = arith.constant 0 : index
    %18 = vector.load %arg5[%c0_11, %c0_12] : memref<1x32xf32, #tpu.memory_space<vmem>>, vector<1x32xf32>
    %19 = vector.broadcast %18 : vector<1x32xf32> to vector<16x32xf32>
    %20 = arith.addf %17, %19 : vector<16x32xf32>
    %21 = arith.truncf %20 : vector<16x32xf32> to vector<16x32xbf16>
    %c0_13 = arith.constant 0 : index
    %c0_14 = arith.constant 0 : index
    %22 = vector.load %arg6[%c0_13, %c0_14] : memref<32x8xbf16, #tpu.memory_space<vmem>>, vector<32x8xbf16>
    %cst_15 = arith.constant dense<0.000000e+00> : vector<16x8xf32>
    %23 = tpu.matmul %21, %22, %cst_15 {dimension_numbers = #tpu.dot_dimension_numbers<[1], [0], [0], [1], [0, 0, 1, 1], [], []>} : vector<16x32xbf16>, vector<32x8xbf16>, vector<16x8xf32> -> vector<16x8xf32>
    %c0_16 = arith.constant 0 : index
    %c0_17 = arith.constant 0 : index
    %24 = vector.load %arg7[%c0_16, %c0_17] : memref<1x8xf32, #tpu.memory_space<vmem>>, vector<1x8xf32>
    %25 = vector.broadcast %24 : vector<1x8xf32> to vector<16x8xf32>
    %26 = arith.addf %23, %25 : vector<16x8xf32>
    %cst_18 = arith.constant dense<0xFF800000> : vector<16xf32>
    %27 = vector.multi_reduction <maximumf>, %26, %cst_18 [1] : vector<16x8xf32> to vector<16xf32>
    %28 = vector.shape_cast %27 : vector<16xf32> to vector<16x1xf32>
    %29 = vector.broadcast %28 : vector<16x1xf32> to vector<16x8xf32>
    %30 = arith.subf %26, %29 : vector<16x8xf32>
    %31 = math.exp %30 : vector<16x8xf32>
    %cst_19 = arith.constant dense<0.000000e+00> : vector<16xf32>
    %32 = vector.multi_reduction <add>, %31, %cst_19 [1] : vector<16x8xf32> to vector<16xf32>
    %33 = vector.shape_cast %32 : vector<16xf32> to vector<16x1xf32>
    %34 = math.log %33 : vector<16x1xf32>
    %35 = arith.addf %28, %34 : vector<16x1xf32>
    %36 = vector.broadcast %35 : vector<16x1xf32> to vector<16x8xf32>
    %37 = arith.subf %26, %36 : vector<16x8xf32>
    %c0_20 = arith.constant 0 : index
    %c0_21 = arith.constant 0 : index
    %38 = vector.load %arg8[%c0_20, %c0_21] : memref<16x8xf32, #tpu.memory_space<vmem>>, vector<16x8xf32>
    tpu.vector_store %arg8[%c0_20, %c0_21], %37 {strides = array<i32>} : memref<16x8xf32, #tpu.memory_space<vmem>>, vector<16x8xf32>,
    return
  }
  func.func @transform_0(%arg0: i32) -> (i32, i32) {
    %c0_i32 = arith.constant 0 : i32
    %c0_i32_0 = arith.constant 0 : i32
    return %arg0, %c0_i32 : i32, i32
  }
  func.func @transform_1(%arg0: i32) -> (i32, i32) {
    %c0_i32 = arith.constant 0 : i32
    %c0_i32_0 = arith.constant 0 : i32
    %c0_i32_1 = arith.constant 0 : i32
    return %c0_i32, %c0_i32_0 : i32, i32
  }
  func.func @transform_2(%arg0: i32) -> (i32, i32) {
    %c0_i32 = arith.constant 0 : i32
    %c0_i32_0 = arith.constant 0 : i32
    %c0_i32_1 = arith.constant 0 : i32
    return %c0_i32, %c0_i32_0 : i32, i32
  }
  func.func @transform_3(%arg0: i32) -> (i32, i32) {
    %c0_i32 = arith.constant 0 : i32
    %c0_i32_0 = arith.constant 0 : i32
    %c0_i32_1 = arith.constant 0 : i32
    return %c0_i32, %c0_i32_0 : i32, i32
  }
  func.func @transform_4(%arg0: i32) -> (i32, i32) {
    %c0_i32 = arith.constant 0 : i32
    %c0_i32_0 = arith.constant 0 : i32
    %c0_i32_1 = arith.constant 0 : i32
    return %c0_i32, %c0_i32_0 : i32, i32
  }
  func.func @transform_5(%arg0: i32) -> (i32, i32) {
    %c0_i32 = arith.constant 0 : i32
    %c0_i32_0 = arith.constant 0 : i32
    %c0_i32_1 = arith.constant 0 : i32
    return %c0_i32, %c0_i32_0 : i32, i32
  }
  func.func @transform_6(%arg0: i32) -> (i32, i32) {
    %c0_i32 = arith.constant 0 : i32
    %c0_i32_0 = arith.constant 0 : i32
    %c0_i32_1 = arith.constant 0 : i32
    return %c0_i32, %c0_i32_0 : i32, i32
  }
  func.func @transform_7(%arg0: i32) -> (i32, i32) {
    %c0_i32 = arith.constant 0 : i32
    %c0_i32_0 = arith.constant 0 : i32
    return %arg0, %c0_i32 : i32, i32
  }
}

</mosaic_0001>

<llo_original>
// kernel: tpu_custom_call.1
$region0: #{tpu_custom_call.1}
  #allocation0 [shape = 'u32[]', space=smem, size = 0x4, offset = 0x4, fixed_abs, tag = 'smem constant byte address 0x4 - core index']
  #allocation1 [shape = 'u32[144,128]{1,0:T(1,128)}', space=vmem, size = 0x12000, scoped, tag = 'internal scratch']
  %s0 = inlined_call_operand.vmem [shape: f32[16,32], index: 0, kind: input, shape index: {}]
  %s1 = inlined_call_operand.hbm [shape: bf16[32,32], index: 1, kind: input, shape index: {}]
  %s2 = inlined_call_operand.vmem [shape: f32[1,32], index: 2, kind: input, shape index: {}]
  %s3 = inlined_call_operand.hbm [shape: bf16[32,32], index: 3, kind: input, shape index: {}]
  %s4 = inlined_call_operand.vmem [shape: f32[1,32], index: 4, kind: input, shape index: {}]
  %s5 = inlined_call_operand.vmem [shape: bf16[32,8], index: 5, kind: input, shape index: {}]
  %s6 = inlined_call_operand.vmem [shape: f32[1,8], index: 6, kind: input, shape index: {}]
  %s7 = inlined_call_operand.vmem [shape: f32[16,8], index: 7, kind: output, shape index: {}]
  %s8 = sld [smem:[#allocation0]]
  $region46: #{tpu_custom_call.1} parent=0
    _
  %s10 = ssub.s32 1, %s8
  %s11 = scalar_select 0, %s10, %s8
  $region1: #{tpu_custom_call.1} parent=0
    #allocation2 [shape = 'u8[8192]{0}', space=vmem, size = 0x2000, scoped, tag = 'input window, operand 1, single buffered']
    #allocation3 [shape = 's32[1]{0}', space=sflag, size = 0x4, scoped, tag = 'scoped memory for tpu_custom_call.1']
    #allocation4 [shape = 'u8[8192]{0}', space=vmem, size = 0x2000, scoped, tag = 'input window, operand 3, single buffered']
    #allocation5 [shape = 's32[1]{0}', space=sflag, size = 0x4, scoped, tag = 'scoped memory for tpu_custom_call.1']
    %12 = vsyncpa [#allocation3], 0
    %13 = vsyncpa [#allocation5], 0
    // Predicated region
    $region2: #{tpu_custom_call.1} parent=1 // pred_check
      _
    $region3: #{tpu_custom_call.1} parent=1 // pred_check_branch
      %15 = sbr.rel (0) target = $region5
    $region4: #{tpu_custom_call.1} parent=1 // pred_region
      _
    $region5: #{tpu_custom_call.1} parent=1 // pred_fallthru
      _
    // Predicated region
    $region6: #{tpu_custom_call.1} parent=1 // pred_check
      _
    $region7: #{tpu_custom_call.1} parent=1 // pred_check_branch
      %17 = sbr.rel (0) target = $region9
    $region8: #{tpu_custom_call.1} parent=1 // pred_region
      %s19 = ssub.s32 256, 256
      %20 = vsyncadd [#allocation3], %s19
      %s21 = sshll.u32 [#allocation2], 4
      %s22 = int_to_ptr.vmem [resolvable:$true] %s21
      %27 = dma.hbm_to_vmem [thread:$0]  %s1, 256, %s22, [#allocation3], 64, 64, 4
    $region9: #{tpu_custom_call.1} parent=1 // pred_fallthru
      _
    // Predicated region
    $region10: #{tpu_custom_call.1} parent=1 // pred_check
      _
    $region11: #{tpu_custom_call.1} parent=1 // pred_check_branch
      %29 = sbr.rel (0) target = $region13
    $region12: #{tpu_custom_call.1} parent=1 // pred_region
      _
    $region13: #{tpu_custom_call.1} parent=1 // pred_fallthru
      _
    // Predicated region
    $region14: #{tpu_custom_call.1} parent=1 // pred_check
      _
    $region15: #{tpu_custom_call.1} parent=1 // pred_check_branch
      %31 = sbr.rel (0) target = $region17
    $region16: #{tpu_custom_call.1} parent=1 // pred_region
      %s33 = ssub.s32 256, 256
      %34 = vsyncadd [#allocation5], %s33
      %s35 = sshll.u32 [#allocation4], 4
      %s36 = int_to_ptr.vmem [resolvable:$true] %s35
      %41 = dma.hbm_to_vmem [thread:$0]  %s3, 256, %s36, [#allocation5], 64, 64, 4
    $region17: #{tpu_custom_call.1} parent=1 // pred_fallthru
      _
    // Predicated region
    $region18: #{tpu_custom_call.1} parent=1 // pred_check
      _
    $region19: #{tpu_custom_call.1} parent=1 // pred_check_branch
      %43 = sbr.rel (0) target = $region21
    $region20: #{tpu_custom_call.1} parent=1 // pred_region
      _
    $region21: #{tpu_custom_call.1} parent=1 // pred_fallthru
      _
    // Predicated region
    $region22: #{tpu_custom_call.1} parent=1 // pred_check
      _
    $region23: #{tpu_custom_call.1} parent=1 // pred_check_branch
      %45 = sbr.rel (0) target = $region25
    $region24: #{tpu_custom_call.1} parent=1 // pred_region
      _
    $region25: #{tpu_custom_call.1} parent=1 // pred_fallthru
      _
    // Predicated region
    $region26: #{tpu_custom_call.1} parent=1 // pred_check
      _
    $region27: #{tpu_custom_call.1} parent=1 // pred_check_branch
      %47 = sbr.rel (0) target = $region29
    $region28: #{tpu_custom_call.1} parent=1 // pred_region
      _
    $region29: #{tpu_custom_call.1} parent=1 // pred_fallthru
      _
    // Predicated region
    $region30: #{tpu_custom_call.1} parent=1 // pred_check
      _
    $region31: #{tpu_custom_call.1} parent=1 // pred_check_branch
      %49 = sbr.rel (0) target = $region33
    $region32: #{tpu_custom_call.1} parent=1 // pred_region
      %50 = dma.done [#allocation3], 256
    $region33: #{tpu_custom_call.1} parent=1 // pred_fallthru
      _
    // Predicated region
    $region34: #{tpu_custom_call.1} parent=1 // pred_check
      _
    $region35: #{tpu_custom_call.1} parent=1 // pred_check_branch
      %52 = sbr.rel (0) target = $region37
    $region36: #{tpu_custom_call.1} parent=1 // pred_region
      %53 = dma.done [#allocation5], 256
    $region37: #{tpu_custom_call.1} parent=1 // pred_fallthru
      _
    %v55 = vld [vmem:[%s0] sm:$0xff]
    %v56 = vld [vmem:[%s0 + $0x8] sm:$0xff]
    %v57 = vpack.c.bf16 %v56, %v55
    %v58 = vld [vmem:[#allocation2] sm:$0xf]
    %v59 = vld [vmem:[#allocation2 + $0x4] sm:$0xf]
    %v60 = vld [vmem:[#allocation2 + $0x8] sm:$0xf]
    %v61 = vld [vmem:[#allocation2 + $0xc] sm:$0xf]
    %v62 = vld [vmem:[%s2] sm:$0x1]
    %v64 = vlaneseq
    %v65 = vshrl.u32 %v64, 7
    %v66 = vsub.s32 0, %v65
    %v67 = vrot.slane %v62, %v66
    %v73 = vunpack.c.l.b16 %v58
    %v74 = vunpack.c.l.b16 %v59
    %v75 = vunpack.c.l.b16 %v60
    %v76 = vunpack.c.l.b16 %v61
    %v77 = vpack.c.b16 %v74, %v73
    %v78 = vpack.c.b16 %v76, %v75
    %vm81 = vcmask 261120
    %v83 = vsel %vm81, %v57, 0
    %85 = vmatprep.subr.bf16.mxu0 0
    %86 = vmatpush1.bf16.msra.mxu0 %v77
    %87 = vmatprep.subr.bf16.mxu0 0
    %88 = vmatpush1.bf16.msra.mxu0 %v78
    %89 = vmatprep.subr.bf16.mxu0 0
    %90 = vmatpush1.bf16.msra.mxu0 0
    %91 = vmatprep.subr.bf16.mxu0 0
    %92 = vmatpush1.bf16.msra.mxu0 0
    %93 = vmatprep.subr.bf16.mxu0 0
    %94 = vmatpush1.bf16.msra.mxu0 0
    %95 = vmatprep.subr.bf16.mxu0 0
    %96 = vmatpush1.bf16.msra.mxu0 0
    %97 = vmatprep.subr.bf16.mxu0 0
    %98 = vmatpush1.bf16.msra.mxu0 0
    %99 = vmatprep.subr.bf16.mxu0 0
    %100 = vmatpush1.bf16.msra.mxu0 0
    %101 = vmatprep.subr.bf16.mxu0 0
    %102 = vmatpush1.bf16.msra.mxu0 0
    %103 = vmatprep.subr.bf16.mxu0 0
    %104 = vmatpush1.bf16.msra.mxu0 0
    %105 = vmatprep.subr.bf16.mxu0 0
    %106 = vmatpush1.bf16.msra.mxu0 0
    %107 = vmatprep.subr.bf16.mxu0 0
    %108 = vmatpush1.bf16.msra.mxu0 0
    %109 = vmatprep.subr.bf16.mxu0 0
    %110 = vmatpush1.bf16.msra.mxu0 0
    %111 = vmatprep.subr.bf16.mxu0 0
    %112 = vmatpush1.bf16.msra.mxu0 0
    %113 = vmatprep.subr.bf16.mxu0 0
    %114 = vmatpush1.bf16.msra.mxu0 0
    %115 = vmatprep.subr.bf16.mxu0 0
    %116 = vmatpush1.bf16.msra.mxu0 0
    %117 = vmatprep.mubr.bf16.mxu0 0
    %118 = vmatmul.mubr.bf16.gmra.mrb[0].mxu0 %v83
    %v119 = vpop.f32.mrb[0].mxu0
    %v120 = vadd.f32 %v67, %v119
    %v121 = vpop.f32.mrb[0].mxu0
    %v122 = vpop.f32.mrb[0].mxu0
    %v123 = vadd.f32 %v67, %v122
    %v124 = vpop.f32.mrb[0].mxu0
    %125 = vdwg.mxu0
    %v126 = vmul.f32 %v120, 0.5
    %v127 = vmul.f32 %v123, 0.5
    %v128 = vmul.f32 %v120, 0.70710677
    %v129 = vmul.f32 %v123, 0.70710677
    %v130 = verf.f32.pop %v128
    %v131 = verf.f32.pop %v129
    %v132 = vadd.f32 %v130, 1.0
    %v133 = vadd.f32 %v131, 1.0
    %v134 = vmul.f32 %v126, %v132
    %v135 = vmul.f32 %v127, %v133
    %v136 = vpack.c.bf16 %v135, %v134
    %v137 = vld [vmem:[#allocation4] sm:$0xf]
    %v138 = vld [vmem:[#allocation4 + $0x4] sm:$0xf]
    %v139 = vld [vmem:[#allocation4 + $0x8] sm:$0xf]
    %v140 = vld [vmem:[#allocation4 + $0xc] sm:$0xf]
    %v141 = vld [vmem:[%s4] sm:$0x1]
    %v143 = vlaneseq
    %v144 = vshrl.u32 %v143, 7
    %v145 = vsub.s32 0, %v144
    %v146 = vrot.slane %v141, %v145
    %v152 = vunpack.c.l.b16 %v137
    %v153 = vunpack.c.l.b16 %v138
    %v154 = vunpack.c.l.b16 %v139
    %v155 = vunpack.c.l.b16 %v140
    %v156 = vpack.c.b16 %v153, %v152
    %v157 = vpack.c.b16 %v155, %v154
    %v161 = vsel %vm81, %v136, 0
    %163 = vmatprep.subr.bf16.mxu0 0
    %164 = vmatpush1.bf16.msra.mxu0 %v156
    %165 = vmatprep.subr.bf16.mxu0 0
    %166 = vmatpush1.bf16.msra.mxu0 %v157
    %167 = vmatprep.subr.bf16.mxu0 0
    %168 = vmatpush1.bf16.msra.mxu0 0
    %169 = vmatprep.subr.bf16.mxu0 0
    %170 = vmatpush1.bf16.msra.mxu0 0
    %171 = vmatprep.subr.bf16.mxu0 0
    %172 = vmatpush1.bf16.msra.mxu0 0
    %173 = vmatprep.subr.bf16.mxu0 0
    %174 = vmatpush1.bf16.msra.mxu0 0
    %175 = vmatprep.subr.bf16.mxu0 0
    %176 = vmatpush1.bf16.msra.mxu0 0
    %177 = vmatprep.subr.bf16.mxu0 0
    %178 = vmatpush1.bf16.msra.mxu0 0
    %179 = vmatprep.subr.bf16.mxu0 0
    %180 = vmatpush1.bf16.msra.mxu0 0
    %181 = vmatprep.subr.bf16.mxu0 0
    %182 = vmatpush1.bf16.msra.mxu0 0
    %183 = vmatprep.subr.bf16.mxu0 0
    %184 = vmatpush1.bf16.msra.mxu0 0
    %185 = vmatprep.subr.bf16.mxu0 0
    %186 = vmatpush1.bf16.msra.mxu0 0
    %187 = vmatprep.subr.bf16.mxu0 0
    %188 = vmatpush1.bf16.msra.mxu0 0
    %189 = vmatprep.subr.bf16.mxu0 0
    %190 = vmatpush1.bf16.msra.mxu0 0
    %191 = vmatprep.subr.bf16.mxu0 0
    %192 = vmatpush1.bf16.msra.mxu0 0
    %193 = vmatprep.subr.bf16.mxu0 0
    %194 = vmatpush1.bf16.msra.mxu0 0
    %195 = vmatprep.mubr.bf16.mxu0 0
    %196 = vmatmul.mubr.bf16.gmra.mrb[0].mxu0 %v161
    %v197 = vpop.f32.mrb[0].mxu0
    %v198 = vadd.f32 %v146, %v197
    %v199 = vpop.f32.mrb[0].mxu0
    %v200 = vpop.f32.mrb[0].mxu0
    %v201 = vadd.f32 %v146, %v200
    %v202 = vpop.f32.mrb[0].mxu0
    %203 = vdwg.mxu0
    %v204 = vpack.c.bf16 %v201, %v198
    %v205 = vld [vmem:[%s5] sm:$0xf]
    %v206 = vld [vmem:[%s5 + $0x4] sm:$0xf]
    %v207 = vld [vmem:[%s5 + $0x8] sm:$0xf]
    %v208 = vld [vmem:[%s5 + $0xc] sm:$0xf]
    %v209 = vld [vmem:[%s6] sm:$0x1]
    %v211 = vlaneseq
    %v212 = vshrl.u32 %v211, 7
    %v213 = vsub.s32 0, %v212
    %v214 = vrot.slane %v209, %v213
    %v220 = vunpack.c.l.b16 %v205
    %v221 = vunpack.c.l.b16 %v206
    %v222 = vunpack.c.l.b16 %v207
    %v223 = vunpack.c.l.b16 %v208
    %v224 = vpack.c.b16 %v221, %v220
    %v225 = vpack.c.b16 %v223, %v222
    %v229 = vsel %vm81, %v204, 0
    %231 = vmatprep.subr.bf16.mxu0 0
    %232 = vmatpush1.bf16.msra.mxu0 %v224
    %233 = vmatprep.subr.bf16.mxu0 0
    %234 = vmatpush1.bf16.msra.mxu0 %v225
    %235 = vmatprep.subr.bf16.mxu0 0
    %236 = vmatpush1.bf16.msra.mxu0 0
    %237 = vmatprep.subr.bf16.mxu0 0
    %238 = vmatpush1.bf16.msra.mxu0 0
    %239 = vmatprep.subr.bf16.mxu0 0
    %240 = vmatpush1.bf16.msra.mxu0 0
    %241 = vmatprep.subr.bf16.mxu0 0
    %242 = vmatpush1.bf16.msra.mxu0 0
    %243 = vmatprep.subr.bf16.mxu0 0
    %244 = vmatpush1.bf16.msra.mxu0 0
    %245 = vmatprep.subr.bf16.mxu0 0
    %246 = vmatpush1.bf16.msra.mxu0 0
    %247 = vmatprep.subr.bf16.mxu0 0
    %248 = vmatpush1.bf16.msra.mxu0 0
    %249 = vmatprep.subr.bf16.mxu0 0
    %250 = vmatpush1.bf16.msra.mxu0 0
    %251 = vmatprep.subr.bf16.mxu0 0
    %252 = vmatpush1.bf16.msra.mxu0 0
    %253 = vmatprep.subr.bf16.mxu0 0
    %254 = vmatpush1.bf16.msra.mxu0 0
    %255 = vmatprep.subr.bf16.mxu0 0
    %256 = vmatpush1.bf16.msra.mxu0 0
    %257 = vmatprep.subr.bf16.mxu0 0
    %258 = vmatpush1.bf16.msra.mxu0 0
    %259 = vmatprep.subr.bf16.mxu0 0
    %260 = vmatpush1.bf16.msra.mxu0 0
    %261 = vmatprep.subr.bf16.mxu0 0
    %262 = vmatpush1.bf16.msra.mxu0 0
    %263 = vmatprep.mubr.bf16.mxu0 0
    %264 = vmatmul.mubr.bf16.gmra.mrb[0].mxu0 %v229
    %v265 = vpop.f32.mrb[0].mxu0
    %v266 = vadd.f32 %v214, %v265
    %v267 = vpop.f32.mrb[0].mxu0
    %v268 = vpop.f32.mrb[0].mxu0
    %v269 = vadd.f32 %v214, %v268
    %v270 = vpop.f32.mrb[0].mxu0
    %271 = vdwg.mxu0
    %vm272 = vcmask 64512
    %v273 = vsel %vm272, %v266, -inf
    %274 = vmax.xlane.f32.xlu0 %v273
    %v275 = vpop.xlane.xlu0 %274
    %v276 = vsel %vm272, %v269, -inf
    %277 = vmax.xlane.f32.xlu0 %v276
    %v278 = vpop.xlane.xlu0 %277
    %v279 = vsub.f32 %v266, %v275
    %v280 = vsub.f32 %v269, %v278
    %v281 = vmul.f32 %v279, 1.442695
    %v282 = vpow.pop %v281
    %v283 = vmul.f32 %v280, 1.442695
    %v284 = vpow.pop %v283
    %v285 = vsel %vm272, %v282, 0.0
    %286 = vadd.xlane.f32.xlu0 %v285
    %v287 = vpop.xlane.xlu0 %286
    %v288 = vsel %vm272, %v284, 0.0
    %289 = vadd.xlane.f32.xlu0 %v288
    %v290 = vpop.xlane.xlu0 %289
    %v291 = vlog2.pop %v287
    %v292 = vmul.f32 %v291, 0.6931472
    %v293 = vlog2.pop %v290
    %v294 = vmul.f32 %v293, 0.6931472
    %v295 = vadd.f32 %v275, %v292
    %v296 = vadd.f32 %v278, %v294
    %v297 = vsub.f32 %v266, %v295
    %v298 = vsub.f32 %v269, %v296
    %299 = vst.msk [vmem:[%s7] sm:$0xff] %vm272, %v297
    %300 = vst.msk [vmem:[%s7 + $0x8] sm:$0xff] %vm272, %v298
    // Predicated region
    $region38: #{tpu_custom_call.1} parent=1 // pred_check
      _
    $region39: #{tpu_custom_call.1} parent=1 // pred_check_branch
      %302 = sbr.rel (0) target = $region41
    $region40: #{tpu_custom_call.1} parent=1 // pred_region
      _
    $region41: #{tpu_custom_call.1} parent=1 // pred_fallthru
      _
    // Predicated region
    $region42: #{tpu_custom_call.1} parent=1 // pred_check
      _
    $region43: #{tpu_custom_call.1} parent=1 // pred_check_branch
      %304 = sbr.rel (0) target = $region45
    $region44: #{tpu_custom_call.1} parent=1 // pred_region
      _
    $region45: #{tpu_custom_call.1} parent=1 // pred_fallthru
      _
    %305 = vsyncpa [#allocation3], 1
    %306 = vsyncpa [#allocation5], 1

</llo_original>
